<compile_context>
chip_gen: v5e
topology: v5e:2x2
jax: 0.10.0
libtpu: 0.0.40
codegen_flags: <defaults>
</compile_context>

<pallas_src>
import functools

import jax
import jax.numpy as jnp
from jax import lax
from jax.experimental import pallas as pl
from jax.experimental.pallas import tpu as pltpu


def _basic_sample_kernel(v_ref, vox_ref, o_ref, acc_ref, *,
                         D, H, W, dhw_tile, matmul_dtype):
    # v_ref:   (1, 3, Nt)        vertex coords (rows = x, y, z), lane-dense
    # vox_ref: (1, Cp, dhw_tile) volume chunk: channels on sublanes, DHW on lanes
    # o_ref:   (1, Cp, Nt)       output tile, lane-dense over vertices
    # acc_ref: (Cp, Nt) f32      accumulator, resident across the DHW grid axis
    k = pl.program_id(2)

    @pl.when(k == 0)
    def _init():
        acc_ref[...] = jnp.zeros_like(acc_ref)

    verts = v_ref[0]                       # (3, Nt) f32
    x = verts[0:1, :]                      # (1, Nt) -> indexes W
    y = verts[1:2, :]                      # (1, Nt) -> indexes H
    z = verts[2:3, :]                      # (1, Nt) -> indexes D

    # align_corners=True un-normalization, then border clamp (grid_sample with
    # padding_mode='border' clamps the coordinate before computing weights).
    ix = jnp.clip((x + 1.0) * (0.5 * (W - 1)), 0.0, float(W - 1))
    iy = jnp.clip((y + 1.0) * (0.5 * (H - 1)), 0.0, float(H - 1))
    iz = jnp.clip((z + 1.0) * (0.5 * (D - 1)), 0.0, float(D - 1))

    # Per-row (local DHW index) voxel coordinates, as (dhw_tile, 1) f32 columns.
    # f32 divide + floor with a +0.5 bias: exact for DHW < 2^23 voxels.
    r = lax.broadcasted_iota(jnp.int32, (dhw_tile, 1), 0).astype(jnp.float32)
    r = r + (k * dhw_tile).astype(jnp.float32)
    hw = float(H * W)
    zr = jnp.floor((r + 0.5) / hw)
    rem = r - zr * hw
    yr = jnp.floor((rem + 0.5) / float(W))
    xr = rem - yr * float(W)

    # Separable trilinear "hat" weights, transposed: rows = local DHW index,
    # cols = vertex.  hat(t) = max(0, 1 - |t|) reproduces the (1-f, f) corner
    # weights exactly (rows with |coord diff| >= 1 get weight 0), including the
    # border-clamped cases, so wmat is the exact sparse grid_sample operator.
    bx = jnp.maximum(0.0, 1.0 - jnp.abs(xr - ix))   # (dhw_tile, Nt)
    by = jnp.maximum(0.0, 1.0 - jnp.abs(yr - iy))
    bz = jnp.maximum(0.0, 1.0 - jnp.abs(zr - iz))
    wmat = bx * by * bz

    # (Cp, dhw_tile) @ (dhw_tile, Nt) -> (Cp, Nt), lane-dense result, f32 acc.
    acc_ref[...] += jnp.dot(vox_ref[0].astype(matmul_dtype),
                            wmat.astype(matmul_dtype),
                            preferred_element_type=jnp.float32)

    @pl.when(k == pl.num_programs(2) - 1)
    def _finalize():
        o_ref[0] = acc_ref[...].astype(o_ref.dtype)


def basic_sample(voxel_features, vertices, *, n_tile=128, dhw_tile=512,
                 matmul_dtype=jnp.bfloat16):
    """Pallas equivalent of BasicSample.forward.

    voxel_features: (B, C, D, H, W) float32
    vertices:       (B, N, 3) float32, grid_sample normalized coords in [-1, 1]
    returns:        (B, N, C) float32
    """
    B, C, D, H, W = voxel_features.shape
    _, N, _ = vertices.shape
    DHW = D * H * W

    assert n_tile % 128 == 0 and dhw_tile % 128 == 0

    # Clamp tiles to the (padded) problem size, keeping 128-lane alignment.
    dhw_tile = min(dhw_tile, ((DHW + 127) // 128) * 128)
    n_tile = min(n_tile, ((N + 127) // 128) * 128)

    c_pad = ((C + 7) // 8) * 8                       # sublane-align channels
    n_pad = ((N + n_tile - 1) // n_tile) * n_tile
    dhw_pad = ((DHW + dhw_tile - 1) // dhw_tile) * dhw_tile

    # Wrapper-side layout plumbing (lane-dense presentation, no compute):
    #   volume  -> (B, Cp, DHW)  (channels on sublanes, flattened space on lanes)
    #   vertices-> (B, 3, Np)    (x/y/z as lane-dense rows)
    vox = voxel_features.reshape(B, C, DHW)
    vox = jnp.pad(vox, ((0, 0), (0, c_pad - C), (0, dhw_pad - DHW)))
    verts = jnp.transpose(vertices, (0, 2, 1))
    verts = jnp.pad(verts, ((0, 0), (0, 0), (0, n_pad - N)))

    grid = (B, n_pad // n_tile, dhw_pad // dhw_tile)

    kernel = functools.partial(_basic_sample_kernel, D=D, H=H, W=W,
                               dhw_tile=dhw_tile, matmul_dtype=matmul_dtype)

    out = pl.pallas_call(
        kernel,
        out_shape=jax.ShapeDtypeStruct((B, c_pad, n_pad), jnp.float32),
        grid_spec=pltpu.PrefetchScalarGridSpec(
            num_scalar_prefetch=0,
            grid=grid,
            in_specs=[
                pl.BlockSpec((1, 3, n_tile), lambda b, n, k: (b, 0, n)),
                pl.BlockSpec((1, c_pad, dhw_tile), lambda b, n, k: (b, 0, k)),
            ],
            out_specs=pl.BlockSpec((1, c_pad, n_tile), lambda b, n, k: (b, 0, n)),
            scratch_shapes=[pltpu.VMEM((c_pad, n_tile), jnp.float32)],
        ),
        compiler_params=pltpu.CompilerParams(
            dimension_semantics=("parallel", "parallel", "arbitrary"),
            # Tiles are tiny here; explicit limit with headroom keeps the same
            # config valid on v7x's 64 MiB VMEM as well as v5e/v6e.
            vmem_limit_bytes=32 * 1024 * 1024,
        ),
    )(verts, vox)

    # (B, Cp, Np) -> (B, N, C)
    return jnp.transpose(out[:, :C, :N], (0, 2, 1))


def _reference(voxel_features, vertices):
    # Pure-JAX reference of grid_sample(..., mode='bilinear',
    # padding_mode='border', align_corners=True) for 5-D inputs.
    B, C, D, H, W = voxel_features.shape
    x = vertices[..., 0]
    y = vertices[..., 1]
    z = vertices[..., 2]
    ix = jnp.clip((x + 1.0) * 0.5 * (W - 1), 0.0, W - 1)
    iy = jnp.clip((y + 1.0) * 0.5 * (H - 1), 0.0, H - 1)
    iz = jnp.clip((z + 1.0) * 0.5 * (D - 1), 0.0, D - 1)
    ix0 = jnp.floor(ix).astype(jnp.int32)
    iy0 = jnp.floor(iy).astype(jnp.int32)
    iz0 = jnp.floor(iz).astype(jnp.int32)
    fx = ix - ix0
    fy = iy - iy0
    fz = iz - iz0
    ix1 = jnp.minimum(ix0 + 1, W - 1)
    iy1 = jnp.minimum(iy0 + 1, H - 1)
    iz1 = jnp.minimum(iz0 + 1, D - 1)

    bidx = jnp.arange(B)[:, None, None]
    cidx = jnp.arange(C)[None, :, None]

    def gather(zi, yi, xi):
        return voxel_features[bidx, cidx,
                              zi[:, None, :], yi[:, None, :], xi[:, None, :]]

    out = jnp.zeros((B, C, vertices.shape[1]), jnp.float32)
    for zi, wz in ((iz0, 1.0 - fz), (iz1, fz)):
        for yi, wy in ((iy0, 1.0 - fy), (iy1, fy)):
            for xi, wx in ((ix0, 1.0 - fx), (ix1, fx)):
                out = out + (wz * wy * wx)[:, None, :] * gather(zi, yi, xi)
    return jnp.transpose(out, (0, 2, 1))  # (B, N, C)


if __name__ == "__main__":
    key = jax.random.PRNGKey(0)
    k1, k2 = jax.random.split(key)

    B, C, D, H, W = 2, 4, 8, 8, 8      # DHW = 512
    N = 256                            # query vertices (2 N-tiles of 128)

    voxel_features = jax.random.normal(k1, (B, C, D, H, W), jnp.float32)
    vertices = jax.random.uniform(k2, (B, N, 3), jnp.float32,
                                  minval=-1.0, maxval=1.0)

    # dhw_tile=256 -> two reduction chunks, exercising the accumulator path.
    fn = jax.jit(lambda vox, v: basic_sample(vox, v, n_tile=128, dhw_tile=256))
    out = fn(voxel_features, vertices)
    out = jax.block_until_ready(out)

    ref = _reference(voxel_features, vertices)
    assert out.shape == (B, N, C)
    # bf16 MXU operands (f32 accumulation) -> loosened tolerance vs f32 reference.
    assert jnp.allclose(out, ref, atol=5e-2, rtol=5e-2), "mismatch vs reference"

    print("KERNEL_OK")
</pallas_src>

<mosaic_0001>
module attributes {stable_mosaic.version = 11 : i64} {
  func.func @_basic_sample_kernel(%arg0: i32, %arg1: i32, %arg2: i32, %arg3: memref<1x3x128xf32, #tpu.memory_space<vmem>>, %arg4: memref<1x8x256xf32, #tpu.memory_space<vmem>>, %arg5: memref<1x8x128xf32, #tpu.memory_space<vmem>>, %arg6: memref<8x128xf32, #tpu.memory_space<vmem>>) attributes {dimension_semantics = [#tpu.dimension_semantics<parallel>, #tpu.dimension_semantics<parallel>, #tpu.dimension_semantics<arbitrary>], iteration_bounds = array<i64: 2, 2, 2>, scalar_prefetch = 0 : i64, scratch_operands = 1 : i64, tpu.core_type = #tpu.core_type<tc>, window_params = [{transform_indices = @transform_0, window_bounds = array<i64: 1, 3, 128>}, {transform_indices = @transform_1, window_bounds = array<i64: 1, 8, 256>}, {transform_indices = @transform_2, window_bounds = array<i64: 1, 8, 128>}]} {
    %c0_i32 = arith.constant 0 : i32
    %0 = arith.cmpi eq, %arg2, %c0_i32 : i32
    %1 = arith.extui %0 : i1 to i32
    %c0_i32_0 = arith.constant 0 : i32
    %2 = arith.cmpi ne, %1, %c0_i32_0 : i32
    scf.if %2 {
      %cst_35 = arith.constant 0.000000e+00 : f32
      %91 = vector.broadcast %cst_35 : f32 to vector<8x128xf32>
      %c0_36 = arith.constant 0 : index
      %c0_37 = arith.constant 0 : index
      %92 = vector.load %arg6[%c0_36, %c0_37] : memref<8x128xf32, #tpu.memory_space<vmem>>, vector<8x128xf32>
      tpu.vector_store %arg6[%c0_36, %c0_37], %91 {strides = array<i32>} : memref<8x128xf32, #tpu.memory_space<vmem>>, vector<8x128xf32>,
    } else {
    }
    %c0 = arith.constant 0 : index
    %c0_1 = arith.constant 0 : index
    %c0_2 = arith.constant 0 : index
    %3 = vector.load %arg3[%c0, %c0_1, %c0_2] : memref<1x3x128xf32, #tpu.memory_space<vmem>>, vector<1x3x128xf32>
    %4 = vector.shape_cast %3 : vector<1x3x128xf32> to vector<3x128xf32>
    %5 = vector.extract_strided_slice %4 {offsets = [0, 0], sizes = [1, 128], strides = [1, 1]} : vector<3x128xf32> to vector<1x128xf32>
    %6 = vector.extract_strided_slice %4 {offsets = [1, 0], sizes = [1, 128], strides = [1, 1]} : vector<3x128xf32> to vector<1x128xf32>
    %7 = vector.extract_strided_slice %4 {offsets = [2, 0], sizes = [1, 128], strides = [1, 1]} : vector<3x128xf32> to vector<1x128xf32>
    %cst = arith.constant 1.000000e+00 : f32
    %8 = vector.broadcast %cst : f32 to vector<1x128xf32>
    %9 = arith.addf %5, %8 : vector<1x128xf32>
    %cst_3 = arith.constant 3.500000e+00 : f32
    %10 = vector.broadcast %cst_3 : f32 to vector<1x128xf32>
    %11 = arith.mulf %9, %10 : vector<1x128xf32>
    %cst_4 = arith.constant 0.000000e+00 : f32
    %cst_5 = arith.constant 7.000000e+00 : f32
    %12 = vector.broadcast %cst_4 : f32 to vector<1x128xf32>
    %13 = arith.maximumf %12, %11 : vector<1x128xf32>
    %14 = vector.broadcast %cst_5 : f32 to vector<1x128xf32>
    %15 = arith.minimumf %14, %13 : vector<1x128xf32>
    %cst_6 = arith.constant 1.000000e+00 : f32
    %16 = vector.broadcast %cst_6 : f32 to vector<1x128xf32>
    %17 = arith.addf %6, %16 : vector<1x128xf32>
    %cst_7 = arith.constant 3.500000e+00 : f32
    %18 = vector.broadcast %cst_7 : f32 to vector<1x128xf32>
    %19 = arith.mulf %17, %18 : vector<1x128xf32>
    %cst_8 = arith.constant 0.000000e+00 : f32
    %cst_9 = arith.constant 7.000000e+00 : f32
    %20 = vector.broadcast %cst_8 : f32 to vector<1x128xf32>
    %21 = arith.maximumf %20, %19 : vector<1x128xf32>
    %22 = vector.broadcast %cst_9 : f32 to vector<1x128xf32>
    %23 = arith.minimumf %22, %21 : vector<1x128xf32>
    %cst_10 = arith.constant 1.000000e+00 : f32
    %24 = vector.broadcast %cst_10 : f32 to vector<1x128xf32>
    %25 = arith.addf %7, %24 : vector<1x128xf32>
    %cst_11 = arith.constant 3.500000e+00 : f32
    %26 = vector.broadcast %cst_11 : f32 to vector<1x128xf32>
    %27 = arith.mulf %25, %26 : vector<1x128xf32>
    %cst_12 = arith.constant 0.000000e+00 : f32
    %cst_13 = arith.constant 7.000000e+00 : f32
    %28 = vector.broadcast %cst_12 : f32 to vector<1x128xf32>
    %29 = arith.maximumf %28, %27 : vector<1x128xf32>
    %30 = vector.broadcast %cst_13 : f32 to vector<1x128xf32>
    %31 = arith.minimumf %30, %29 : vector<1x128xf32>
    %32 = tpu.iota {dimensions = array<i32: 0>} : vector<256x1xi32>
    %33 = arith.sitofp %32 : vector<256x1xi32> to vector<256x1xf32>
    %c256_i32 = arith.constant 256 : i32
    %34 = arith.muli %arg2, %c256_i32 : i32
    %35 = arith.sitofp %34 : i32 to f32
    %36 = vector.broadcast %35 : f32 to vector<256x1xf32>
    %37 = arith.addf %33, %36 : vector<256x1xf32>
    %cst_14 = arith.constant 5.000000e-01 : f32
    %38 = vector.broadcast %cst_14 : f32 to vector<256x1xf32>
    %39 = arith.addf %37, %38 : vector<256x1xf32>
    %cst_15 = arith.constant 6.400000e+01 : f32
    %40 = vector.broadcast %cst_15 : f32 to vector<256x1xf32>
    %41 = arith.divf %39, %40 : vector<256x1xf32>
    %42 = math.floor %41 : vector<256x1xf32>
    %cst_16 = arith.constant 6.400000e+01 : f32
    %43 = vector.broadcast %cst_16 : f32 to vector<256x1xf32>
    %44 = arith.mulf %42, %43 : vector<256x1xf32>
    %45 = arith.subf %37, %44 : vector<256x1xf32>
    %cst_17 = arith.constant 5.000000e-01 : f32
    %46 = vector.broadcast %cst_17 : f32 to vector<256x1xf32>
    %47 = arith.addf %45, %46 : vector<256x1xf32>
    %cst_18 = arith.constant 8.000000e+00 : f32
    %48 = vector.broadcast %cst_18 : f32 to vector<256x1xf32>
    %49 = arith.divf %47, %48 : vector<256x1xf32>
    %50 = math.floor %49 : vector<256x1xf32>
    %cst_19 = arith.constant 8.000000e+00 : f32
    %51 = vector.broadcast %cst_19 : f32 to vector<256x1xf32>
    %52 = arith.mulf %50, %51 : vector<256x1xf32>
    %53 = arith.subf %45, %52 : vector<256x1xf32>
    %54 = vector.broadcast %53 : vector<256x1xf32> to vector<256x128xf32>
    %55 = vector.broadcast %15 : vector<1x128xf32> to vector<256x128xf32>
    %56 = arith.subf %54, %55 : vector<256x128xf32>
    %57 = math.absf %56 : vector<256x128xf32>
    %cst_20 = arith.constant 1.000000e+00 : f32
    %58 = vector.broadcast %cst_20 : f32 to vector<256x128xf32>
    %59 = arith.subf %58, %57 : vector<256x128xf32>
    %cst_21 = arith.constant 0.000000e+00 : f32
    %60 = vector.broadcast %cst_21 : f32 to vector<256x128xf32>
    %61 = arith.maximumf %60, %59 : vector<256x128xf32>
    %62 = vector.broadcast %50 : vector<256x1xf32> to vector<256x128xf32>
    %63 = vector.broadcast %23 : vector<1x128xf32> to vector<256x128xf32>
    %64 = arith.subf %62, %63 : vector<256x128xf32>
    %65 = math.absf %64 : vector<256x128xf32>
    %cst_22 = arith.constant 1.000000e+00 : f32
    %66 = vector.broadcast %cst_22 : f32 to vector<256x128xf32>
    %67 = arith.subf %66, %65 : vector<256x128xf32>
    %cst_23 = arith.constant 0.000000e+00 : f32
    %68 = vector.broadcast %cst_23 : f32 to vector<256x128xf32>
    %69 = arith.maximumf %68, %67 : vector<256x128xf32>
    %70 = vector.broadcast %42 : vector<256x1xf32> to vector<256x128xf32>
    %71 = vector.broadcast %31 : vector<1x128xf32> to vector<256x128xf32>
    %72 = arith.subf %70, %71 : vector<256x128xf32>
    %73 = math.absf %72 : vector<256x128xf32>
    %cst_24 = arith.constant 1.000000e+00 : f32
    %74 = vector.broadcast %cst_24 : f32 to vector<256x128xf32>
    %75 = arith.subf %74, %73 : vector<256x128xf32>
    %cst_25 = arith.constant 0.000000e+00 : f32
    %76 = vector.broadcast %cst_25 : f32 to vector<256x128xf32>
    %77 = arith.maximumf %76, %75 : vector<256x128xf32>
    %78 = arith.mulf %61, %69 : vector<256x128xf32>
    %79 = arith.mulf %78, %77 : vector<256x128xf32>
    %c0_26 = arith.constant 0 : index
    %c0_27 = arith.constant 0 : index
    %80 = vector.load %arg6[%c0_26, %c0_27] : memref<8x128xf32, #tpu.memory_space<vmem>>, vector<8x128xf32>
    %c0_28 = arith.constant 0 : index
    %c0_29 = arith.constant 0 : index
    %c0_30 = arith.constant 0 : index
    %81 = vector.load %arg4[%c0_28, %c0_29, %c0_30] : memref<1x8x256xf32, #tpu.memory_space<vmem>>, vector<1x8x256xf32>
    %82 = vector.shape_cast %81 : vector<1x8x256xf32> to vector<8x256xf32>
    %83 = arith.truncf %82 : vector<8x256xf32> to vector<8x256xbf16>
    %84 = arith.truncf %79 : vector<256x128xf32> to vector<256x128xbf16>
    %cst_31 = arith.constant dense<0.000000e+00> : vector<8x128xf32>
    %85 = tpu.matmul %83, %84, %cst_31 {dimension_numbers = #tpu.dot_dimension_numbers<[1], [0], [0], [1], [0, 0, 1, 1], [], []>} : vector<8x256xbf16>, vector<256x128xbf16>, vector<8x128xf32> -> vector<8x128xf32>
    %86 = arith.addf %80, %85 : vector<8x128xf32>
    %c0_32 = arith.constant 0 : index
    %c0_33 = arith.constant 0 : index
    %87 = vector.load %arg6[%c0_32, %c0_33] : memref<8x128xf32, #tpu.memory_space<vmem>>, vector<8x128xf32>
    tpu.vector_store %arg6[%c0_32, %c0_33], %86 {strides = array<i32>} : memref<8x128xf32, #tpu.memory_space<vmem>>, vector<8x128xf32>,
    %c1_i32 = arith.constant 1 : i32
    %88 = arith.cmpi eq, %arg2, %c1_i32 : i32
    %89 = arith.extui %88 : i1 to i32
    %c0_i32_34 = arith.constant 0 : i32
    %90 = arith.cmpi ne, %89, %c0_i32_34 : i32
    scf.if %90 {
      %c0_35 = arith.constant 0 : index
      %c0_36 = arith.constant 0 : index
      %91 = vector.load %arg6[%c0_35, %c0_36] : memref<8x128xf32, #tpu.memory_space<vmem>>, vector<8x128xf32>
      %c0_37 = arith.constant 0 : index
      %c0_38 = arith.constant 0 : index
      %c0_39 = arith.constant 0 : index
      %92 = vector.load %arg5[%c0_37, %c0_38, %c0_39] : memref<1x8x128xf32, #tpu.memory_space<vmem>>, vector<1x8x128xf32>
      %93 = vector.shape_cast %92 : vector<1x8x128xf32> to vector<8x128xf32>
      %94 = vector.shape_cast %91 : vector<8x128xf32> to vector<1x8x128xf32>
      tpu.vector_store %arg5[%c0_37, %c0_38, %c0_39], %94 {strides = array<i32>} : memref<1x8x128xf32, #tpu.memory_space<vmem>>, vector<1x8x128xf32>,
    } else {
    }
    return
  }
  func.func @transform_0(%arg0: i32, %arg1: i32, %arg2: i32) -> (i32, i32, i32) {
    %c0_i32 = arith.constant 0 : i32
    %c0_i32_0 = arith.constant 0 : i32
    return %arg0, %c0_i32, %arg1 : i32, i32, i32
  }
  func.func @transform_1(%arg0: i32, %arg1: i32, %arg2: i32) -> (i32, i32, i32) {
    %c0_i32 = arith.constant 0 : i32
    %c0_i32_0 = arith.constant 0 : i32
    return %arg0, %c0_i32, %arg2 : i32, i32, i32
  }
  func.func @transform_2(%arg0: i32, %arg1: i32, %arg2: i32) -> (i32, i32, i32) {
    %c0_i32 = arith.constant 0 : i32
    %c0_i32_0 = arith.constant 0 : i32
    return %arg0, %c0_i32, %arg1 : i32, i32, i32
  }
}

</mosaic_0001>

<llo_original>
// kernel: _lambda_.1
$region0: #{_lambda_.1}
  #allocation0 [shape = 'u32[]', space=smem, size = 0x4, offset = 0x4, fixed_abs, tag = 'smem constant byte address 0x4 - core index']
  #allocation1 [shape = 'u32[72,128]{1,0:T(1,128)}', space=vmem, size = 0x9000, scoped, tag = 'internal scratch']
  #allocation2 [shape = 'f32[8,128]{1,0:T(8,128)}', space=vmem, size = 0x1000, scoped, tag = 'scratch operand']
  %s0 = inlined_call_operand.vmem [shape: f32[2,3,256], index: 0, kind: input, shape index: {}]
  %s1 = inlined_call_operand.vmem [shape: f32[2,8,512], index: 1, kind: input, shape index: {}]
  %s2 = inlined_call_operand.vmem [shape: f32[2,8,256], index: 2, kind: output, shape index: {}]
  %s3 = sld [smem:[#allocation0]]
  $region49: #{_lambda_.1} parent=0
    _
  %s5 = ssub.s32 1, %s3
  %s6 = scalar_select 0, %s5, %s3
  loop: start=0, step=1, limit=10
  $region2: #{_lambda_.1} parent=0 // loop_pre_header
    _
  $region3: #{_lambda_.1} parent=0 // loop_header
    %s8 = sphi 0, %s12
    %p9 = scmp.ge.s32.totalorder %s8, 10
    %s15 = sphi 0, %s34
    %s16 = sphi 0, %s30
    %s17 = sphi 0, %s26
    %s18 = sphi 0, %s15
    %s19 = sphi 0, %s16
    %s20 = sphi 0, %s17
    %s21 = sphi 0, %s18
    %s22 = sphi 0, %s19
    %s23 = sphi 0, %s20
    %s39 = sphi 0, %s41
    %s42 = sphi 0, %s39
    %s43 = sphi 0, %s42
    %s59 = sphi 0, %s43
    %s67 = sphi 0, %s69
    %s70 = sphi 0, %s67
    %s71 = sphi 0, %s70
    %s87 = sphi 0, %s71
    %s95 = sphi 0, %s97
    %s98 = sphi 0, %s95
    %s99 = sphi 0, %s98
    %s115 = sphi 0, %s99
  $region4: #{_lambda_.1} parent=0 // loop_header_branch
    %11 = sbr.rel (%p9) target = $region8
  $region5: #{_lambda_.1} parent=0 // loop_body
    %s13 = ssub.s32 %s8, 1
    %s14 = ssub.s32 %s8, 2
    %s24 = sadd.s32 1, %s17
    %p25 = scmp.ge.s32.totalorder %s24, 2
    %s26 = scalar_select %p25, 0, %s24
    %s27 = sadd.s32 1, %s16
    %s28 = scalar_select %p25, %s27, %s16
    %p29 = scmp.ge.s32.totalorder %s28, 2
    %s30 = scalar_select %p29, 0, %s28
    %s31 = sadd.s32 1, %s15
    %s32 = scalar_select %p29, %s31, %s15
    %p33 = scmp.ge.s32.totalorder %s32, 2
    %s34 = scalar_select %p33, 0, %s32
    %s35 = ssub.s32 %s15, %s34
    %s36 = ssub.s32 %s16, %s30
    %s37 = sor.u32 %s35, %s36
    %p38 = scmp.eq.s32.totalorder %s37, 0
    %s40 = sadd.s32 %s39, 1
    %s41 = scalar_select %p38, %s39, %s40
    %p44 = pneg %p38
    %p45 = scmp.eq.s32.totalorder %s8, 7
    %p46 = por %p44, %p45
    %p47 = scmp.ne.s32.totalorder %s39, %s42
    %p48 = scmp.eq.s32.totalorder %s8, 0
    %p49 = por %p47, %p48
    %p50 = scmp.ne.s32.totalorder %s39, %s42
    %p51 = scmp.eq.s32.totalorder %s13, 7
    %p52 = por %p50, %p51
    %p53 = scmp.ne.s32.totalorder %s42, %s43
    %p54 = scmp.eq.s32.totalorder %s13, 0
    %p55 = por %p53, %p54
    %p56 = scmp.ne.s32.totalorder %s42, %s43
    %p57 = scmp.eq.s32.totalorder %s14, 7
    %p58 = por %p56, %p57
    %p60 = scmp.ne.s32.totalorder %s43, %s59
    %p61 = scmp.eq.s32.totalorder %s14, 0
    %p62 = por %p60, %p61
    %s63 = ssub.s32 %s15, %s34
    %s64 = ssub.s32 %s17, %s26
    %s65 = sor.u32 %s63, %s64
    %p66 = scmp.eq.s32.totalorder %s65, 0
    %s68 = sadd.s32 %s67, 1
    %s69 = scalar_select %p66, %s67, %s68
    %p72 = pneg %p66
    %p73 = scmp.eq.s32.totalorder %s8, 7
    %p74 = por %p72, %p73
    %p75 = scmp.ne.s32.totalorder %s67, %s70
    %p76 = scmp.eq.s32.totalorder %s8, 0
    %p77 = por %p75, %p76
    %p78 = scmp.ne.s32.totalorder %s67, %s70
    %p79 = scmp.eq.s32.totalorder %s13, 7
    %p80 = por %p78, %p79
    %p81 = scmp.ne.s32.totalorder %s70, %s71
    %p82 = scmp.eq.s32.totalorder %s13, 0
    %p83 = por %p81, %p82
    %p84 = scmp.ne.s32.totalorder %s70, %s71
    %p85 = scmp.eq.s32.totalorder %s14, 7
    %p86 = por %p84, %p85
    %p88 = scmp.ne.s32.totalorder %s71, %s87
    %p89 = scmp.eq.s32.totalorder %s14, 0
    %p90 = por %p88, %p89
    %s91 = ssub.s32 %s15, %s34
    %s92 = ssub.s32 %s16, %s30
    %s93 = sor.u32 %s91, %s92
    %p94 = scmp.eq.s32.totalorder %s93, 0
    %s96 = sadd.s32 %s95, 1
    %s97 = scalar_select %p94, %s95, %s96
    %p100 = pneg %p94
    %p101 = scmp.eq.s32.totalorder %s8, 7
    %p102 = por %p100, %p101
    %p103 = scmp.ne.s32.totalorder %s95, %s98
    %p104 = scmp.eq.s32.totalorder %s8, 0
    %p105 = por %p103, %p104
    %p106 = scmp.ne.s32.totalorder %s95, %s98
    %p107 = scmp.eq.s32.totalorder %s13, 7
    %p108 = por %p106, %p107
    %p109 = scmp.ne.s32.totalorder %s98, %s99
    %p110 = scmp.eq.s32.totalorder %s13, 0
    %p111 = por %p109, %p110
    %p112 = scmp.ne.s32.totalorder %s98, %s99
    %p113 = scmp.eq.s32.totalorder %s14, 7
    %p114 = por %p112, %p113
    %p116 = scmp.ne.s32.totalorder %s99, %s115
    %p117 = scmp.eq.s32.totalorder %s14, 0
    %p118 = por %p116, %p117
    %p119 = scmp.le.s32.totalorder 1, %s8
    %p120 = scmp.lt.s32.totalorder %s8, 9
    %p121 = pnand %p119, %p120
    %p122 = pneg %p121
    // Predicated region
    $region9: #{_lambda_.1} parent=5 // pred_check
      _
    $region10: #{_lambda_.1} parent=5 // pred_check_branch
      %124 = sbr.rel (%p121) target = $region12
    $region11: #{_lambda_.1} parent=5 // pred_region
      %s125 = ssub.s32 %s8, 1
    $region12: #{_lambda_.1} parent=5 // pred_fallthru
      _
    %p126 = scmp.lt.s32.totalorder %s8, 8
    // Predicated region
    $region13: #{_lambda_.1} parent=5 // pred_check
      %p127 = pneg %p126
    $region14: #{_lambda_.1} parent=5 // pred_check_branch
      %129 = sbr.rel (%p127) target = $region16
    $region15: #{_lambda_.1} parent=5 // pred_region
      // Predicated region
      $region17: #{_lambda_.1} parent=15 // pred_check
        %p130 = pneg %p49
      $region18: #{_lambda_.1} parent=15 // pred_check_branch
        %132 = sbr.rel (%p130) target = $region20
      $region19: #{_lambda_.1} parent=15 // pred_region
        %p133 = scmp.lt.s32.totalorder %s15, 1
        %s134 = scalar_select %p133, %s15, 1
        %p135 = scmp.lt.s32.totalorder %s16, 1
        %s136 = scalar_select %p135, %s16, 1
        %s137 = smul.addr %s134, 2
        %s138 = sadd.s32 %s136, %s137
        %s139 = smul.addr %s138, 4
        %s140 = scalar_lea.vmem %s0, %s139
      $region20: #{_lambda_.1} parent=15 // pred_fallthru
        _
      // Predicated region
      $region21: #{_lambda_.1} parent=15 // pred_check
        %p141 = pneg %p77
      $region22: #{_lambda_.1} parent=15 // pred_check_branch
        %143 = sbr.rel (%p141) target = $region24
      $region23: #{_lambda_.1} parent=15 // pred_region
        %s144 = smul.u32 2, %s17
        %p145 = scmp.lt.s32.totalorder %s15, 1
        %s146 = scalar_select %p145, %s15, 1
        %p147 = scmp.lt.s32.totalorder %s144, 3
        %s148 = scalar_select %p147, %s144, 3
        %s149 = smul.addr %s146, 4
        %s150 = sadd.s32 %s148, %s149
        %s151 = smul.addr %s150, 8
        %s152 = scalar_lea.vmem %s1, %s151
        %s153 = smul.u32 2, %s17
      $region24: #{_lambda_.1} parent=15 // pred_fallthru
        _
    $region16: #{_lambda_.1} parent=5 // pred_fallthru
      _
    %p154 = scmp.le.s32.totalorder 1, %s8
    %p155 = scmp.lt.s32.totalorder %s8, 9
    %p156 = pnand %p154, %p155
    %p157 = pneg %p156
    // Predicated region
    $region25: #{_lambda_.1} parent=5 // pred_check
      _
    $region26: #{_lambda_.1} parent=5 // pred_check_branch
      %159 = sbr.rel (%p156) target = $region28
    $region27: #{_lambda_.1} parent=5 // pred_region
      %s160 = ssub.s32 %s8, 1
      %p161 = scmp.lt.s32.totalorder %s18, 1
      %s162 = scalar_select %p161, %s18, 1
      %p163 = scmp.lt.s32.totalorder %s19, 1
      %s164 = scalar_select %p163, %s19, 1
      %s165 = smul.addr %s162, 2
      %s166 = sadd.s32 %s164, %s165
      %s167 = smul.addr %s166, 4
      %s168 = scalar_lea.vmem %s0, %s167
      %p169 = pneg %p55
      %p170 = pneg %p52
      %s171 = smul.u32 2, %s20
      %p172 = scmp.lt.s32.totalorder %s18, 1
      %s173 = scalar_select %p172, %s18, 1
      %p174 = scmp.lt.s32.totalorder %s171, 3
      %s175 = scalar_select %p174, %s171, 3
      %s176 = smul.addr %s173, 4
      %s177 = sadd.s32 %s175, %s176
      %s178 = smul.addr %s177, 8
      %s179 = scalar_lea.vmem %s1, %s178
      %p180 = pneg %p83
      %p181 = pneg %p80
      %p182 = pneg %p111
      %p183 = pneg %p108
      %p184 = scmp.lt.s32.totalorder %s18, 1
      %s185 = scalar_select %p184, %s18, 1
      %p186 = scmp.lt.s32.totalorder %s19, 1
      %s187 = scalar_select %p186, %s19, 1
      %s188 = smul.addr %s185, 2
      %s189 = sadd.s32 %s187, %s188
      %s190 = smul.addr %s189, 8
      %s191 = scalar_lea.vmem %s2, %s190
      %p192 = scmp.lt.s32.totalorder %s18, 1
      %s193 = scalar_select %p192, %s18, 1
      %p194 = scmp.lt.s32.totalorder %s19, 1
      %s195 = scalar_select %p194, %s19, 1
      %s196 = smul.addr %s193, 2
      %s197 = sadd.s32 %s195, %s196
      %s198 = smul.addr %s197, 4
      %s199 = scalar_lea.vmem %s0, %s198
      %s200 = smul.u32 2, %s20
      %p201 = scmp.lt.s32.totalorder %s18, 1
      %s202 = scalar_select %p201, %s18, 1
      %p203 = scmp.lt.s32.totalorder %s200, 3
      %s204 = scalar_select %p203, %s200, 3
      %s205 = smul.addr %s202, 4
      %s206 = sadd.s32 %s204, %s205
      %s207 = smul.addr %s206, 8
      %s208 = scalar_lea.vmem %s1, %s207
      %s209 = smul.u32 2, %s20
      %p210 = scmp.lt.s32.totalorder %s18, 1
      %s211 = scalar_select %p210, %s18, 1
      %p212 = scmp.lt.s32.totalorder %s19, 1
      %s213 = scalar_select %p212, %s19, 1
      %s214 = smul.addr %s211, 2
      %s215 = sadd.s32 %s213, %s214
      %s216 = smul.addr %s215, 8
      %s217 = scalar_lea.vmem %s2, %s216
      %p218 = scmp.eq.s32.totalorder %s20, 0
      // Predicated region
      $region29: #{_lambda_.1} parent=27 // pred_check
        %p219 = pneg %p218
      $region30: #{_lambda_.1} parent=27 // pred_check_branch
        %221 = sbr.rel (%p219) target = $region32
      $region31: #{_lambda_.1} parent=27 // pred_region
        %222 = vst [vmem:[#allocation2] sm:$0xff] 0.0
      $region32: #{_lambda_.1} parent=27 // pred_fallthru
        _
      %v223 = vld [vmem:[%s199] sm:$0x7]
      %v224 = vadd.f32 %v223, 1.0
      %v225 = vmul.f32 %v224, 3.5
      %v226 = vmax.f32 %v225, 0.0
      %v227 = vmin.f32 %v226, 7.0
      %v228 = vlaneseq
      %v229 = vshrl.u32 %v228, 7
      %v230 = vadd.s32 %v229, 8
      %v231 = vadd.s32 %v229, 16
      %v232 = vadd.s32 %v229, 24
      %v233 = vadd.s32 %v229, 32
      %v234 = vadd.s32 %v229, 40
      %v235 = vadd.s32 %v229, 48
      %v236 = vadd.s32 %v229, 56
      %v237 = vadd.s32 %v229, 64
      %v238 = vadd.s32 %v229, 72
      %v239 = vadd.s32 %v229, 80
      %v240 = vadd.s32 %v229, 88
      %v241 = vadd.s32 %v229, 96
      %v242 = vadd.s32 %v229, 104
      %v243 = vadd.s32 %v229, 112
      %v244 = vadd.s32 %v229, 120
      %v245 = vadd.s32 %v229, 128
      %v246 = vadd.s32 %v229, 136
      %v247 = vadd.s32 %v229, 144
      %v248 = vadd.s32 %v229, 152
      %v249 = vadd.s32 %v229, 160
      %v250 = vadd.s32 %v229, 168
      %v251 = vadd.s32 %v229, 176
      %v252 = vadd.s32 %v229, 184
      %v253 = vadd.s32 %v229, 192
      %v254 = vadd.s32 %v229, 200
      %v255 = vadd.s32 %v229, 208
      %v256 = vadd.s32 %v229, 216
      %v257 = vadd.s32 %v229, 224
      %v258 = vadd.s32 %v229, 232
      %v259 = vadd.s32 %v229, 240
      %v260 = vadd.s32 %v229, 248
      %v261 = vcvt.s32.f32 %v229
      %v262 = vcvt.s32.f32 %v230
      %v263 = vcvt.s32.f32 %v231
      %v264 = vcvt.s32.f32 %v232
      %v265 = vcvt.s32.f32 %v233
      %v266 = vcvt.s32.f32 %v234
      %v267 = vcvt.s32.f32 %v235
      %v268 = vcvt.s32.f32 %v236
      %v269 = vcvt.s32.f32 %v237
      %v270 = vcvt.s32.f32 %v238
      %v271 = vcvt.s32.f32 %v239
      %v272 = vcvt.s32.f32 %v240
      %v273 = vcvt.s32.f32 %v241
      %v274 = vcvt.s32.f32 %v242
      %v275 = vcvt.s32.f32 %v243
      %v276 = vcvt.s32.f32 %v244
      %v277 = vcvt.s32.f32 %v245
      %v278 = vcvt.s32.f32 %v246
      %v279 = vcvt.s32.f32 %v247
      %v280 = vcvt.s32.f32 %v248
      %v281 = vcvt.s32.f32 %v249
      %v282 = vcvt.s32.f32 %v250
      %v283 = vcvt.s32.f32 %v251
      %v284 = vcvt.s32.f32 %v252
      %v285 = vcvt.s32.f32 %v253
      %v286 = vcvt.s32.f32 %v254
      %v287 = vcvt.s32.f32 %v255
      %v288 = vcvt.s32.f32 %v256
      %v289 = vcvt.s32.f32 %v257
      %v290 = vcvt.s32.f32 %v258
      %v291 = vcvt.s32.f32 %v259
      %v292 = vcvt.s32.f32 %v260
      %s293 = smul.u32 %s20, 256
      %s294 = scvt.s32.f32 %s293
      %v295 = vstv %s294
      %v296 = vadd.f32 %v261, %v295
      %v297 = vadd.f32 %v262, %v295
      %v298 = vadd.f32 %v263, %v295
      %v299 = vadd.f32 %v264, %v295
      %v300 = vadd.f32 %v265, %v295
      %v301 = vadd.f32 %v266, %v295
      %v302 = vadd.f32 %v267, %v295
      %v303 = vadd.f32 %v268, %v295
      %v304 = vadd.f32 %v269, %v295
      %v305 = vadd.f32 %v270, %v295
      %v306 = vadd.f32 %v271, %v295
      %v307 = vadd.f32 %v272, %v295
      %v308 = vadd.f32 %v273, %v295
      %v309 = vadd.f32 %v274, %v295
      %v310 = vadd.f32 %v275, %v295
      %v311 = vadd.f32 %v276, %v295
      %v312 = vadd.f32 %v277, %v295
      %v313 = vadd.f32 %v278, %v295
      %v314 = vadd.f32 %v279, %v295
      %v315 = vadd.f32 %v280, %v295
      %v316 = vadd.f32 %v281, %v295
      %v317 = vadd.f32 %v282, %v295
      %v318 = vadd.f32 %v283, %v295
      %v319 = vadd.f32 %v284, %v295
      %v320 = vadd.f32 %v285, %v295
      %v321 = vadd.f32 %v286, %v295
      %v322 = vadd.f32 %v287, %v295
      %v323 = vadd.f32 %v288, %v295
      %v324 = vadd.f32 %v289, %v295
      %v325 = vadd.f32 %v290, %v295
      %v326 = vadd.f32 %v291, %v295
      %v327 = vadd.f32 %v292, %v295
      %v328 = vadd.f32 %v296, 0.5
      %v329 = vadd.f32 %v297, 0.5
      %v330 = vadd.f32 %v298, 0.5
      %v331 = vadd.f32 %v299, 0.5
      %v332 = vadd.f32 %v300, 0.5
      %v333 = vadd.f32 %v301, 0.5
      %v334 = vadd.f32 %v302, 0.5
      %v335 = vadd.f32 %v303, 0.5
      %v336 = vadd.f32 %v304, 0.5
      %v337 = vadd.f32 %v305, 0.5
      %v338 = vadd.f32 %v306, 0.5
      %v339 = vadd.f32 %v307, 0.5
      %v340 = vadd.f32 %v308, 0.5
      %v341 = vadd.f32 %v309, 0.5
      %v342 = vadd.f32 %v310, 0.5
      %v343 = vadd.f32 %v311, 0.5
      %v344 = vadd.f32 %v312, 0.5
      %v345 = vadd.f32 %v313, 0.5
      %v346 = vadd.f32 %v314, 0.5
      %v347 = vadd.f32 %v315, 0.5
      %v348 = vadd.f32 %v316, 0.5
      %v349 = vadd.f32 %v317, 0.5
      %v350 = vadd.f32 %v318, 0.5
      %v351 = vadd.f32 %v319, 0.5
      %v352 = vadd.f32 %v320, 0.5
      %v353 = vadd.f32 %v321, 0.5
      %v354 = vadd.f32 %v322, 0.5
      %v355 = vadd.f32 %v323, 0.5
      %v356 = vadd.f32 %v324, 0.5
      %v357 = vadd.f32 %v325, 0.5
      %v358 = vadd.f32 %v326, 0.5
      %v359 = vadd.f32 %v327, 0.5
      %v360 = vrcp.pop 64.0
      %v361 = vmul.f32 64.0, %v360
      %v362 = vsub.f32 1.0, %v361
      %v363 = vmul.f32 %v360, %v362
      %v364 = vadd.f32 %v360, %v363
      %vm365 = vweird.f32 %v360
      %v366 = vsel %vm365, %v360, %v364
      %v367 = vmul.f32 %v328, %v366
      %v368 = vmul.f32 %v329, %v366
      %v369 = vmul.f32 %v330, %v366
      %v370 = vmul.f32 %v331, %v366
      %v371 = vmul.f32 %v332, %v366
      %v372 = vmul.f32 %v333, %v366
      %v373 = vmul.f32 %v334, %v366
      %v374 = vmul.f32 %v335, %v366
      %v375 = vmul.f32 %v336, %v366
      %v376 = vmul.f32 %v337, %v366
      %v377 = vmul.f32 %v338, %v366
      %v378 = vmul.f32 %v339, %v366
      %v379 = vmul.f32 %v340, %v366
      %v380 = vmul.f32 %v341, %v366
      %v381 = vmul.f32 %v342, %v366
      %v382 = vmul.f32 %v343, %v366
      %v383 = vmul.f32 %v344, %v366
      %v384 = vmul.f32 %v345, %v366
      %v385 = vmul.f32 %v346, %v366
      %v386 = vmul.f32 %v347, %v366
      %v387 = vmul.f32 %v348, %v366
      %v388 = vmul.f32 %v349, %v366
      %v389 = vmul.f32 %v350, %v366
      %v390 = vmul.f32 %v351, %v366
      %v391 = vmul.f32 %v352, %v366
      %v392 = vmul.f32 %v353, %v366
      %v393 = vmul.f32 %v354, %v366
      %v394 = vmul.f32 %v355, %v366
      %v395 = vmul.f32 %v356, %v366
      %v396 = vmul.f32 %v357, %v366
      %v397 = vmul.f32 %v358, %v366
      %v398 = vmul.f32 %v359, %v366
      %v399 = vfloor.f32 %v367
      %v400 = vfloor.f32 %v368
      %v401 = vfloor.f32 %v369
      %v402 = vfloor.f32 %v370
      %v403 = vfloor.f32 %v371
      %v404 = vfloor.f32 %v372
      %v405 = vfloor.f32 %v373
      %v406 = vfloor.f32 %v374
      %v407 = vfloor.f32 %v375
      %v408 = vfloor.f32 %v376
      %v409 = vfloor.f32 %v377
      %v410 = vfloor.f32 %v378
      %v411 = vfloor.f32 %v379
      %v412 = vfloor.f32 %v380
      %v413 = vfloor.f32 %v381
      %v414 = vfloor.f32 %v382
      %v415 = vfloor.f32 %v383
      %v416 = vfloor.f32 %v384
      %v417 = vfloor.f32 %v385
      %v418 = vfloor.f32 %v386
      %v419 = vfloor.f32 %v387
      %v420 = vfloor.f32 %v388
      %v421 = vfloor.f32 %v389
      %v422 = vfloor.f32 %v390
      %v423 = vfloor.f32 %v391
      %v424 = vfloor.f32 %v392
      %v425 = vfloor.f32 %v393
      %v426 = vfloor.f32 %v394
      %v427 = vfloor.f32 %v395
      %v428 = vfloor.f32 %v396
      %v429 = vfloor.f32 %v397
      %v430 = vfloor.f32 %v398
      %v431 = vmul.f32 %v399, 64.0
      %v432 = vmul.f32 %v400, 64.0
      %v433 = vmul.f32 %v401, 64.0
      %v434 = vmul.f32 %v402, 64.0
      %v435 = vmul.f32 %v403, 64.0
      %v436 = vmul.f32 %v404, 64.0
      %v437 = vmul.f32 %v405, 64.0
      %v438 = vmul.f32 %v406, 64.0
      %v439 = vmul.f32 %v407, 64.0
      %v440 = vmul.f32 %v408, 64.0
      %v441 = vmul.f32 %v409, 64.0
      %v442 = vmul.f32 %v410, 64.0
      %v443 = vmul.f32 %v411, 64.0
      %v444 = vmul.f32 %v412, 64.0
      %v445 = vmul.f32 %v413, 64.0
      %v446 = vmul.f32 %v414, 64.0
      %v447 = vmul.f32 %v415, 64.0
      %v448 = vmul.f32 %v416, 64.0
      %v449 = vmul.f32 %v417, 64.0
      %v450 = vmul.f32 %v418, 64.0
      %v451 = vmul.f32 %v419, 64.0
      %v452 = vmul.f32 %v420, 64.0
      %v453 = vmul.f32 %v421, 64.0
      %v454 = vmul.f32 %v422, 64.0
      %v455 = vmul.f32 %v423, 64.0
      %v456 = vmul.f32 %v424, 64.0
      %v457 = vmul.f32 %v425, 64.0
      %v458 = vmul.f32 %v426, 64.0
      %v459 = vmul.f32 %v427, 64.0
      %v460 = vmul.f32 %v428, 64.0
      %v461 = vmul.f32 %v429, 64.0
      %v462 = vmul.f32 %v430, 64.0
      %v463 = vsub.f32 %v296, %v431
      %v464 = vsub.f32 %v297, %v432
      %v465 = vsub.f32 %v298, %v433
      %v466 = vsub.f32 %v299, %v434
      %v467 = vsub.f32 %v300, %v435
      %v468 = vsub.f32 %v301, %v436
      %v469 = vsub.f32 %v302, %v437
      %v470 = vsub.f32 %v303, %v438
      %v471 = vsub.f32 %v304, %v439
      %v472 = vsub.f32 %v305, %v440
      %v473 = vsub.f32 %v306, %v441
      %v474 = vsub.f32 %v307, %v442
      %v475 = vsub.f32 %v308, %v443
      %v476 = vsub.f32 %v309, %v444
      %v477 = vsub.f32 %v310, %v445
      %v478 = vsub.f32 %v311, %v446
      %v479 = vsub.f32 %v312, %v447
      %v480 = vsub.f32 %v313, %v448
      %v481 = vsub.f32 %v314, %v449
      %v482 = vsub.f32 %v315, %v450
      %v483 = vsub.f32 %v316, %v451
      %v484 = vsub.f32 %v317, %v452
      %v485 = vsub.f32 %v318, %v453
      %v486 = vsub.f32 %v319, %v454
      %v487 = vsub.f32 %v320, %v455
      %v488 = vsub.f32 %v321, %v456
      %v489 = vsub.f32 %v322, %v457
      %v490 = vsub.f32 %v323, %v458
      %v491 = vsub.f32 %v324, %v459
      %v492 = vsub.f32 %v325, %v460
      %v493 = vsub.f32 %v326, %v461
      %v494 = vsub.f32 %v327, %v462
      %v495 = vadd.f32 %v463, 0.5
      %v496 = vadd.f32 %v464, 0.5
      %v497 = vadd.f32 %v465, 0.5
      %v498 = vadd.f32 %v466, 0.5
      %v499 = vadd.f32 %v467, 0.5
      %v500 = vadd.f32 %v468, 0.5
      %v501 = vadd.f32 %v469, 0.5
      %v502 = vadd.f32 %v470, 0.5
      %v503 = vadd.f32 %v471, 0.5
      %v504 = vadd.f32 %v472, 0.5
      %v505 = vadd.f32 %v473, 0.5
      %v506 = vadd.f32 %v474, 0.5
      %v507 = vadd.f32 %v475, 0.5
      %v508 = vadd.f32 %v476, 0.5
      %v509 = vadd.f32 %v477, 0.5
      %v510 = vadd.f32 %v478, 0.5
      %v511 = vadd.f32 %v479, 0.5
      %v512 = vadd.f32 %v480, 0.5
      %v513 = vadd.f32 %v481, 0.5
      %v514 = vadd.f32 %v482, 0.5
      %v515 = vadd.f32 %v483, 0.5
      %v516 = vadd.f32 %v484, 0.5
      %v517 = vadd.f32 %v485, 0.5
      %v518 = vadd.f32 %v486, 0.5
      %v519 = vadd.f32 %v487, 0.5
      %v520 = vadd.f32 %v488, 0.5
      %v521 = vadd.f32 %v489, 0.5
      %v522 = vadd.f32 %v490, 0.5
      %v523 = vadd.f32 %v491, 0.5
      %v524 = vadd.f32 %v492, 0.5
      %v525 = vadd.f32 %v493, 0.5
      %v526 = vadd.f32 %v494, 0.5
      %v527 = vrcp.pop 8.0
      %v528 = vmul.f32 8.0, %v527
      %v529 = vsub.f32 1.0, %v528
      %v530 = vmul.f32 %v527, %v529
      %v531 = vadd.f32 %v527, %v530
      %vm532 = vweird.f32 %v527
      %v533 = vsel %vm532, %v527, %v531
      %v534 = vmul.f32 %v495, %v533
      %v535 = vmul.f32 %v496, %v533
      %v536 = vmul.f32 %v497, %v533
      %v537 = vmul.f32 %v498, %v533
      %v538 = vmul.f32 %v499, %v533
      %v539 = vmul.f32 %v500, %v533
      %v540 = vmul.f32 %v501, %v533
      %v541 = vmul.f32 %v502, %v533
      %v542 = vmul.f32 %v503, %v533
      %v543 = vmul.f32 %v504, %v533
      %v544 = vmul.f32 %v505, %v533
      %v545 = vmul.f32 %v506, %v533
      %v546 = vmul.f32 %v507, %v533
      %v547 = vmul.f32 %v508, %v533
      %v548 = vmul.f32 %v509, %v533
      %v549 = vmul.f32 %v510, %v533
      %v550 = vmul.f32 %v511, %v533
      %v551 = vmul.f32 %v512, %v533
      %v552 = vmul.f32 %v513, %v533
      %v553 = vmul.f32 %v514, %v533
      %v554 = vmul.f32 %v515, %v533
      %v555 = vmul.f32 %v516, %v533
      %v556 = vmul.f32 %v517, %v533
      %v557 = vmul.f32 %v518, %v533
      %v558 = vmul.f32 %v519, %v533
      %v559 = vmul.f32 %v520, %v533
      %v560 = vmul.f32 %v521, %v533
      %v561 = vmul.f32 %v522, %v533
      %v562 = vmul.f32 %v523, %v533
      %v563 = vmul.f32 %v524, %v533
      %v564 = vmul.f32 %v525, %v533
      %v565 = vmul.f32 %v526, %v533
      %v566 = vfloor.f32 %v534
      %v567 = vfloor.f32 %v535
      %v568 = vfloor.f32 %v536
      %v569 = vfloor.f32 %v537
      %v570 = vfloor.f32 %v538
      %v571 = vfloor.f32 %v539
      %v572 = vfloor.f32 %v540
      %v573 = vfloor.f32 %v541
      %v574 = vfloor.f32 %v542
      %v575 = vfloor.f32 %v543
      %v576 = vfloor.f32 %v544
      %v577 = vfloor.f32 %v545
      %v578 = vfloor.f32 %v546
      %v579 = vfloor.f32 %v547
      %v580 = vfloor.f32 %v548
      %v581 = vfloor.f32 %v549
      %v582 = vfloor.f32 %v550
      %v583 = vfloor.f32 %v551
      %v584 = vfloor.f32 %v552
      %v585 = vfloor.f32 %v553
      %v586 = vfloor.f32 %v554
      %v587 = vfloor.f32 %v555
      %v588 = vfloor.f32 %v556
      %v589 = vfloor.f32 %v557
      %v590 = vfloor.f32 %v558
      %v591 = vfloor.f32 %v559
      %v592 = vfloor.f32 %v560
      %v593 = vfloor.f32 %v561
      %v594 = vfloor.f32 %v562
      %v595 = vfloor.f32 %v563
      %v596 = vfloor.f32 %v564
      %v597 = vfloor.f32 %v565
      %v598 = vmul.f32 %v566, 8.0
      %v599 = vmul.f32 %v567, 8.0
      %v600 = vmul.f32 %v568, 8.0
      %v601 = vmul.f32 %v569, 8.0
      %v602 = vmul.f32 %v570, 8.0
      %v603 = vmul.f32 %v571, 8.0
      %v604 = vmul.f32 %v572, 8.0
      %v605 = vmul.f32 %v573, 8.0
      %v606 = vmul.f32 %v574, 8.0
      %v607 = vmul.f32 %v575, 8.0
      %v608 = vmul.f32 %v576, 8.0
      %v609 = vmul.f32 %v577, 8.0
      %v610 = vmul.f32 %v578, 8.0
      %v611 = vmul.f32 %v579, 8.0
      %v612 = vmul.f32 %v580, 8.0
      %v613 = vmul.f32 %v581, 8.0
      %v614 = vmul.f32 %v582, 8.0
      %v615 = vmul.f32 %v583, 8.0
      %v616 = vmul.f32 %v584, 8.0
      %v617 = vmul.f32 %v585, 8.0
      %v618 = vmul.f32 %v586, 8.0
      %v619 = vmul.f32 %v587, 8.0
      %v620 = vmul.f32 %v588, 8.0
      %v621 = vmul.f32 %v589, 8.0
      %v622 = vmul.f32 %v590, 8.0
      %v623 = vmul.f32 %v591, 8.0
      %v624 = vmul.f32 %v592, 8.0
      %v625 = vmul.f32 %v593, 8.0
      %v626 = vmul.f32 %v594, 8.0
      %v627 = vmul.f32 %v595, 8.0
      %v628 = vmul.f32 %v596, 8.0
      %v629 = vmul.f32 %v597, 8.0
      %v630 = vsub.f32 %v463, %v598
      %v631 = vsub.f32 %v464, %v599
      %v632 = vsub.f32 %v465, %v600
      %v633 = vsub.f32 %v466, %v601
      %v634 = vsub.f32 %v467, %v602
      %v635 = vsub.f32 %v468, %v603
      %v636 = vsub.f32 %v469, %v604
      %v637 = vsub.f32 %v470, %v605
      %v638 = vsub.f32 %v471, %v606
      %v639 = vsub.f32 %v472, %v607
      %v640 = vsub.f32 %v473, %v608
      %v641 = vsub.f32 %v474, %v609
      %v642 = vsub.f32 %v475, %v610
      %v643 = vsub.f32 %v476, %v611
      %v644 = vsub.f32 %v477, %v612
      %v645 = vsub.f32 %v478, %v613
      %v646 = vsub.f32 %v479, %v614
      %v647 = vsub.f32 %v480, %v615
      %v648 = vsub.f32 %v481, %v616
      %v649 = vsub.f32 %v482, %v617
      %v650 = vsub.f32 %v483, %v618
      %v651 = vsub.f32 %v484, %v619
      %v652 = vsub.f32 %v485, %v620
      %v653 = vsub.f32 %v486, %v621
      %v654 = vsub.f32 %v487, %v622
      %v655 = vsub.f32 %v488, %v623
      %v656 = vsub.f32 %v489, %v624
      %v657 = vsub.f32 %v490, %v625
      %v658 = vsub.f32 %v491, %v626
      %v659 = vsub.f32 %v492, %v627
      %v660 = vsub.f32 %v493, %v628
      %v661 = vsub.f32 %v494, %v629
      %v662 = vperm.slane %v227, 0
      %v663 = vsub.f32 %v630, %v662
      %v664 = vsub.f32 %v631, %v662
      %v665 = vsub.f32 %v632, %v662
      %v666 = vsub.f32 %v633, %v662
      %v667 = vsub.f32 %v634, %v662
      %v668 = vsub.f32 %v635, %v662
      %v669 = vsub.f32 %v636, %v662
      %v670 = vsub.f32 %v637, %v662
      %v671 = vsub.f32 %v638, %v662
      %v672 = vsub.f32 %v639, %v662
      %v673 = vsub.f32 %v640, %v662
      %v674 = vsub.f32 %v641, %v662
      %v675 = vsub.f32 %v642, %v662
      %v676 = vsub.f32 %v643, %v662
      %v677 = vsub.f32 %v644, %v662
      %v678 = vsub.f32 %v645, %v662
      %v679 = vsub.f32 %v646, %v662
      %v680 = vsub.f32 %v647, %v662
      %v681 = vsub.f32 %v648, %v662
      %v682 = vsub.f32 %v649, %v662
      %v683 = vsub.f32 %v650, %v662
      %v684 = vsub.f32 %v651, %v662
      %v685 = vsub.f32 %v652, %v662
      %v686 = vsub.f32 %v653, %v662
      %v687 = vsub.f32 %v654, %v662
      %v688 = vsub.f32 %v655, %v662
      %v689 = vsub.f32 %v656, %v662
      %v690 = vsub.f32 %v657, %v662
      %v691 = vsub.f32 %v658, %v662
      %v692 = vsub.f32 %v659, %v662
      %v693 = vsub.f32 %v660, %v662
      %v694 = vsub.f32 %v661, %v662
      %v695 = vand.u32 2147483647, %v663
      %v696 = vand.u32 2147483647, %v664
      %v697 = vand.u32 2147483647, %v665
      %v698 = vand.u32 2147483647, %v666
      %v699 = vand.u32 2147483647, %v667
      %v700 = vand.u32 2147483647, %v668
      %v701 = vand.u32 2147483647, %v669
      %v702 = vand.u32 2147483647, %v670
      %v703 = vand.u32 2147483647, %v671
      %v704 = vand.u32 2147483647, %v672
      %v705 = vand.u32 2147483647, %v673
      %v706 = vand.u32 2147483647, %v674
      %v707 = vand.u32 2147483647, %v675
      %v708 = vand.u32 2147483647, %v676
      %v709 = vand.u32 2147483647, %v677
      %v710 = vand.u32 2147483647, %v678
      %v711 = vand.u32 2147483647, %v679
      %v712 = vand.u32 2147483647, %v680
      %v713 = vand.u32 2147483647, %v681
      %v714 = vand.u32 2147483647, %v682
      %v715 = vand.u32 2147483647, %v683
      %v716 = vand.u32 2147483647, %v684
      %v717 = vand.u32 2147483647, %v685
      %v718 = vand.u32 2147483647, %v686
      %v719 = vand.u32 2147483647, %v687
      %v720 = vand.u32 2147483647, %v688
      %v721 = vand.u32 2147483647, %v689
      %v722 = vand.u32 2147483647, %v690
      %v723 = vand.u32 2147483647, %v691
      %v724 = vand.u32 2147483647, %v692
      %v725 = vand.u32 2147483647, %v693
      %v726 = vand.u32 2147483647, %v694
      %v727 = vsub.f32 1.0, %v695
      %v728 = vsub.f32 1.0, %v696
      %v729 = vsub.f32 1.0, %v697
      %v730 = vsub.f32 1.0, %v698
      %v731 = vsub.f32 1.0, %v699
      %v732 = vsub.f32 1.0, %v700
      %v733 = vsub.f32 1.0, %v701
      %v734 = vsub.f32 1.0, %v702
      %v735 = vsub.f32 1.0, %v703
      %v736 = vsub.f32 1.0, %v704
      %v737 = vsub.f32 1.0, %v705
      %v738 = vsub.f32 1.0, %v706
      %v739 = vsub.f32 1.0, %v707
      %v740 = vsub.f32 1.0, %v708
      %v741 = vsub.f32 1.0, %v709
      %v742 = vsub.f32 1.0, %v710
      %v743 = vsub.f32 1.0, %v711
      %v744 = vsub.f32 1.0, %v712
      %v745 = vsub.f32 1.0, %v713
      %v746 = vsub.f32 1.0, %v714
      %v747 = vsub.f32 1.0, %v715
      %v748 = vsub.f32 1.0, %v716
      %v749 = vsub.f32 1.0, %v717
      %v750 = vsub.f32 1.0, %v718
      %v751 = vsub.f32 1.0, %v719
      %v752 = vsub.f32 1.0, %v720
      %v753 = vsub.f32 1.0, %v721
      %v754 = vsub.f32 1.0, %v722
      %v755 = vsub.f32 1.0, %v723
      %v756 = vsub.f32 1.0, %v724
      %v757 = vsub.f32 1.0, %v725
      %v758 = vsub.f32 1.0, %v726
      %v759 = vmax.f32 %v727, 0.0
      %v760 = vmax.f32 %v728, 0.0
      %v761 = vmax.f32 %v729, 0.0
      %v762 = vmax.f32 %v730, 0.0
      %v763 = vmax.f32 %v731, 0.0
      %v764 = vmax.f32 %v732, 0.0
      %v765 = vmax.f32 %v733, 0.0
      %v766 = vmax.f32 %v734, 0.0
      %v767 = vmax.f32 %v735, 0.0
      %v768 = vmax.f32 %v736, 0.0
      %v769 = vmax.f32 %v737, 0.0
      %v770 = vmax.f32 %v738, 0.0
      %v771 = vmax.f32 %v739, 0.0
      %v772 = vmax.f32 %v740, 0.0
      %v773 = vmax.f32 %v741, 0.0
      %v774 = vmax.f32 %v742, 0.0
      %v775 = vmax.f32 %v743, 0.0
      %v776 = vmax.f32 %v744, 0.0
      %v777 = vmax.f32 %v745, 0.0
      %v778 = vmax.f32 %v746, 0.0
      %v779 = vmax.f32 %v747, 0.0
      %v780 = vmax.f32 %v748, 0.0
      %v781 = vmax.f32 %v749, 0.0
      %v782 = vmax.f32 %v750, 0.0
      %v783 = vmax.f32 %v751, 0.0
      %v784 = vmax.f32 %v752, 0.0
      %v785 = vmax.f32 %v753, 0.0
      %v786 = vmax.f32 %v754, 0.0
      %v787 = vmax.f32 %v755, 0.0
      %v788 = vmax.f32 %v756, 0.0
      %v789 = vmax.f32 %v757, 0.0
      %v790 = vmax.f32 %v758, 0.0
      %v791 = vperm.slane %v227, 1
      %v792 = vsub.f32 %v566, %v791
      %v793 = vsub.f32 %v567, %v791
      %v794 = vsub.f32 %v568, %v791
      %v795 = vsub.f32 %v569, %v791
      %v796 = vsub.f32 %v570, %v791
      %v797 = vsub.f32 %v571, %v791
      %v798 = vsub.f32 %v572, %v791
      %v799 = vsub.f32 %v573, %v791
      %v800 = vsub.f32 %v574, %v791
      %v801 = vsub.f32 %v575, %v791
      %v802 = vsub.f32 %v576, %v791
      %v803 = vsub.f32 %v577, %v791
      %v804 = vsub.f32 %v578, %v791
      %v805 = vsub.f32 %v579, %v791
      %v806 = vsub.f32 %v580, %v791
      %v807 = vsub.f32 %v581, %v791
      %v808 = vsub.f32 %v582, %v791
      %v809 = vsub.f32 %v583, %v791
      %v810 = vsub.f32 %v584, %v791
      %v811 = vsub.f32 %v585, %v791
      %v812 = vsub.f32 %v586, %v791
      %v813 = vsub.f32 %v587, %v791
      %v814 = vsub.f32 %v588, %v791
      %v815 = vsub.f32 %v589, %v791
      %v816 = vsub.f32 %v590, %v791
      %v817 = vsub.f32 %v591, %v791
      %v818 = vsub.f32 %v592, %v791
      %v819 = vsub.f32 %v593, %v791
      %v820 = vsub.f32 %v594, %v791
      %v821 = vsub.f32 %v595, %v791
      %v822 = vsub.f32 %v596, %v791
      %v823 = vsub.f32 %v597, %v791
      %v824 = vand.u32 2147483647, %v792
      %v825 = vand.u32 2147483647, %v793
      %v826 = vand.u32 2147483647, %v794
      %v827 = vand.u32 2147483647, %v795
      %v828 = vand.u32 2147483647, %v796
      %v829 = vand.u32 2147483647, %v797
      %v830 = vand.u32 2147483647, %v798
      %v831 = vand.u32 2147483647, %v799
      %v832 = vand.u32 2147483647, %v800
      %v833 = vand.u32 2147483647, %v801
      %v834 = vand.u32 2147483647, %v802
      %v835 = vand.u32 2147483647, %v803
      %v836 = vand.u32 2147483647, %v804
      %v837 = vand.u32 2147483647, %v805
      %v838 = vand.u32 2147483647, %v806
      %v839 = vand.u32 2147483647, %v807
      %v840 = vand.u32 2147483647, %v808
      %v841 = vand.u32 2147483647, %v809
      %v842 = vand.u32 2147483647, %v810
      %v843 = vand.u32 2147483647, %v811
      %v844 = vand.u32 2147483647, %v812
      %v845 = vand.u32 2147483647, %v813
      %v846 = vand.u32 2147483647, %v814
      %v847 = vand.u32 2147483647, %v815
      %v848 = vand.u32 2147483647, %v816
      %v849 = vand.u32 2147483647, %v817
      %v850 = vand.u32 2147483647, %v818
      %v851 = vand.u32 2147483647, %v819
      %v852 = vand.u32 2147483647, %v820
      %v853 = vand.u32 2147483647, %v821
      %v854 = vand.u32 2147483647, %v822
      %v855 = vand.u32 2147483647, %v823
      %v856 = vsub.f32 1.0, %v824
      %v857 = vsub.f32 1.0, %v825
      %v858 = vsub.f32 1.0, %v826
      %v859 = vsub.f32 1.0, %v827
      %v860 = vsub.f32 1.0, %v828
      %v861 = vsub.f32 1.0, %v829
      %v862 = vsub.f32 1.0, %v830
      %v863 = vsub.f32 1.0, %v831
      %v864 = vsub.f32 1.0, %v832
      %v865 = vsub.f32 1.0, %v833
      %v866 = vsub.f32 1.0, %v834
      %v867 = vsub.f32 1.0, %v835
      %v868 = vsub.f32 1.0, %v836
      %v869 = vsub.f32 1.0, %v837
      %v870 = vsub.f32 1.0, %v838
      %v871 = vsub.f32 1.0, %v839
      %v872 = vsub.f32 1.0, %v840
      %v873 = vsub.f32 1.0, %v841
      %v874 = vsub.f32 1.0, %v842
      %v875 = vsub.f32 1.0, %v843
      %v876 = vsub.f32 1.0, %v844
      %v877 = vsub.f32 1.0, %v845
      %v878 = vsub.f32 1.0, %v846
      %v879 = vsub.f32 1.0, %v847
      %v880 = vsub.f32 1.0, %v848
      %v881 = vsub.f32 1.0, %v849
      %v882 = vsub.f32 1.0, %v850
      %v883 = vsub.f32 1.0, %v851
      %v884 = vsub.f32 1.0, %v852
      %v885 = vsub.f32 1.0, %v853
      %v886 = vsub.f32 1.0, %v854
      %v887 = vsub.f32 1.0, %v855
      %v888 = vmax.f32 %v856, 0.0
      %v889 = vmax.f32 %v857, 0.0
      %v890 = vmax.f32 %v858, 0.0
      %v891 = vmax.f32 %v859, 0.0
      %v892 = vmax.f32 %v860, 0.0
      %v893 = vmax.f32 %v861, 0.0
      %v894 = vmax.f32 %v862, 0.0
      %v895 = vmax.f32 %v863, 0.0
      %v896 = vmax.f32 %v864, 0.0
      %v897 = vmax.f32 %v865, 0.0
      %v898 = vmax.f32 %v866, 0.0
      %v899 = vmax.f32 %v867, 0.0
      %v900 = vmax.f32 %v868, 0.0
      %v901 = vmax.f32 %v869, 0.0
      %v902 = vmax.f32 %v870, 0.0
      %v903 = vmax.f32 %v871, 0.0
      %v904 = vmax.f32 %v872, 0.0
      %v905 = vmax.f32 %v873, 0.0
      %v906 = vmax.f32 %v874, 0.0
      %v907 = vmax.f32 %v875, 0.0
      %v908 = vmax.f32 %v876, 0.0
      %v909 = vmax.f32 %v877, 0.0
      %v910 = vmax.f32 %v878, 0.0
      %v911 = vmax.f32 %v879, 0.0
      %v912 = vmax.f32 %v880, 0.0
      %v913 = vmax.f32 %v881, 0.0
      %v914 = vmax.f32 %v882, 0.0
      %v915 = vmax.f32 %v883, 0.0
      %v916 = vmax.f32 %v884, 0.0
      %v917 = vmax.f32 %v885, 0.0
      %v918 = vmax.f32 %v886, 0.0
      %v919 = vmax.f32 %v887, 0.0
      %v920 = vperm.slane %v227, 2
      %v921 = vsub.f32 %v399, %v920
      %v922 = vsub.f32 %v400, %v920
      %v923 = vsub.f32 %v401, %v920
      %v924 = vsub.f32 %v402, %v920
      %v925 = vsub.f32 %v403, %v920
      %v926 = vsub.f32 %v404, %v920
      %v927 = vsub.f32 %v405, %v920
      %v928 = vsub.f32 %v406, %v920
      %v929 = vsub.f32 %v407, %v920
      %v930 = vsub.f32 %v408, %v920
      %v931 = vsub.f32 %v409, %v920
      %v932 = vsub.f32 %v410, %v920
      %v933 = vsub.f32 %v411, %v920
      %v934 = vsub.f32 %v412, %v920
      %v935 = vsub.f32 %v413, %v920
      %v936 = vsub.f32 %v414, %v920
      %v937 = vsub.f32 %v415, %v920
      %v938 = vsub.f32 %v416, %v920
      %v939 = vsub.f32 %v417, %v920
      %v940 = vsub.f32 %v418, %v920
      %v941 = vsub.f32 %v419, %v920
      %v942 = vsub.f32 %v420, %v920
      %v943 = vsub.f32 %v421, %v920
      %v944 = vsub.f32 %v422, %v920
      %v945 = vsub.f32 %v423, %v920
      %v946 = vsub.f32 %v424, %v920
      %v947 = vsub.f32 %v425, %v920
      %v948 = vsub.f32 %v426, %v920
      %v949 = vsub.f32 %v427, %v920
      %v950 = vsub.f32 %v428, %v920
      %v951 = vsub.f32 %v429, %v920
      %v952 = vsub.f32 %v430, %v920
      %v953 = vand.u32 2147483647, %v921
      %v954 = vand.u32 2147483647, %v922
      %v955 = vand.u32 2147483647, %v923
      %v956 = vand.u32 2147483647, %v924
      %v957 = vand.u32 2147483647, %v925
      %v958 = vand.u32 2147483647, %v926
      %v959 = vand.u32 2147483647, %v927
      %v960 = vand.u32 2147483647, %v928
      %v961 = vand.u32 2147483647, %v929
      %v962 = vand.u32 2147483647, %v930
      %v963 = vand.u32 2147483647, %v931
      %v964 = vand.u32 2147483647, %v932
      %v965 = vand.u32 2147483647, %v933
      %v966 = vand.u32 2147483647, %v934
      %v967 = vand.u32 2147483647, %v935
      %v968 = vand.u32 2147483647, %v936
      %v969 = vand.u32 2147483647, %v937
      %v970 = vand.u32 2147483647, %v938
      %v971 = vand.u32 2147483647, %v939
      %v972 = vand.u32 2147483647, %v940
      %v973 = vand.u32 2147483647, %v941
      %v974 = vand.u32 2147483647, %v942
      %v975 = vand.u32 2147483647, %v943
      %v976 = vand.u32 2147483647, %v944
      %v977 = vand.u32 2147483647, %v945
      %v978 = vand.u32 2147483647, %v946
      %v979 = vand.u32 2147483647, %v947
      %v980 = vand.u32 2147483647, %v948
      %v981 = vand.u32 2147483647, %v949
      %v982 = vand.u32 2147483647, %v950
      %v983 = vand.u32 2147483647, %v951
      %v984 = vand.u32 2147483647, %v952
      %v985 = vsub.f32 1.0, %v953
      %v986 = vsub.f32 1.0, %v954
      %v987 = vsub.f32 1.0, %v955
      %v988 = vsub.f32 1.0, %v956
      %v989 = vsub.f32 1.0, %v957
      %v990 = vsub.f32 1.0, %v958
      %v991 = vsub.f32 1.0, %v959
      %v992 = vsub.f32 1.0, %v960
      %v993 = vsub.f32 1.0, %v961
      %v994 = vsub.f32 1.0, %v962
      %v995 = vsub.f32 1.0, %v963
      %v996 = vsub.f32 1.0, %v964
      %v997 = vsub.f32 1.0, %v965
      %v998 = vsub.f32 1.0, %v966
      %v999 = vsub.f32 1.0, %v967
      %v1000 = vsub.f32 1.0, %v968
      %v1001 = vsub.f32 1.0, %v969
      %v1002 = vsub.f32 1.0, %v970
      %v1003 = vsub.f32 1.0, %v971
      %v1004 = vsub.f32 1.0, %v972
      %v1005 = vsub.f32 1.0, %v973
      %v1006 = vsub.f32 1.0, %v974
      %v1007 = vsub.f32 1.0, %v975
      %v1008 = vsub.f32 1.0, %v976
      %v1009 = vsub.f32 1.0, %v977
      %v1010 = vsub.f32 1.0, %v978
      %v1011 = vsub.f32 1.0, %v979
      %v1012 = vsub.f32 1.0, %v980
      %v1013 = vsub.f32 1.0, %v981
      %v1014 = vsub.f32 1.0, %v982
      %v1015 = vsub.f32 1.0, %v983
      %v1016 = vsub.f32 1.0, %v984
      %v1017 = vmax.f32 %v985, 0.0
      %v1018 = vmax.f32 %v986, 0.0
      %v1019 = vmax.f32 %v987, 0.0
      %v1020 = vmax.f32 %v988, 0.0
      %v1021 = vmax.f32 %v989, 0.0
      %v1022 = vmax.f32 %v990, 0.0
      %v1023 = vmax.f32 %v991, 0.0
      %v1024 = vmax.f32 %v992, 0.0
      %v1025 = vmax.f32 %v993, 0.0
      %v1026 = vmax.f32 %v994, 0.0
      %v1027 = vmax.f32 %v995, 0.0
      %v1028 = vmax.f32 %v996, 0.0
      %v1029 = vmax.f32 %v997, 0.0
      %v1030 = vmax.f32 %v998, 0.0
      %v1031 = vmax.f32 %v999, 0.0
      %v1032 = vmax.f32 %v1000, 0.0
      %v1033 = vmax.f32 %v1001, 0.0
      %v1034 = vmax.f32 %v1002, 0.0
      %v1035 = vmax.f32 %v1003, 0.0
      %v1036 = vmax.f32 %v1004, 0.0
      %v1037 = vmax.f32 %v1005, 0.0
      %v1038 = vmax.f32 %v1006, 0.0
      %v1039 = vmax.f32 %v1007, 0.0
      %v1040 = vmax.f32 %v1008, 0.0
      %v1041 = vmax.f32 %v1009, 0.0
      %v1042 = vmax.f32 %v1010, 0.0
      %v1043 = vmax.f32 %v1011, 0.0
      %v1044 = vmax.f32 %v1012, 0.0
      %v1045 = vmax.f32 %v1013, 0.0
      %v1046 = vmax.f32 %v1014, 0.0
      %v1047 = vmax.f32 %v1015, 0.0
      %v1048 = vmax.f32 %v1016, 0.0
      %v1049 = vmul.f32 %v759, %v888
      %v1050 = vmul.f32 %v760, %v889
      %v1051 = vmul.f32 %v761, %v890
      %v1052 = vmul.f32 %v762, %v891
      %v1053 = vmul.f32 %v763, %v892
      %v1054 = vmul.f32 %v764, %v893
      %v1055 = vmul.f32 %v765, %v894
      %v1056 = vmul.f32 %v766, %v895
      %v1057 = vmul.f32 %v767, %v896
      %v1058 = vmul.f32 %v768, %v897
      %v1059 = vmul.f32 %v769, %v898
      %v1060 = vmul.f32 %v770, %v899
      %v1061 = vmul.f32 %v771, %v900
      %v1062 = vmul.f32 %v772, %v901
      %v1063 = vmul.f32 %v773, %v902
      %v1064 = vmul.f32 %v774, %v903
      %v1065 = vmul.f32 %v775, %v904
      %v1066 = vmul.f32 %v776, %v905
      %v1067 = vmul.f32 %v777, %v906
      %v1068 = vmul.f32 %v778, %v907
      %v1069 = vmul.f32 %v779, %v908
      %v1070 = vmul.f32 %v780, %v909
      %v1071 = vmul.f32 %v781, %v910
      %v1072 = vmul.f32 %v782, %v911
      %v1073 = vmul.f32 %v783, %v912
      %v1074 = vmul.f32 %v784, %v913
      %v1075 = vmul.f32 %v785, %v914
      %v1076 = vmul.f32 %v786, %v915
      %v1077 = vmul.f32 %v787, %v916
      %v1078 = vmul.f32 %v788, %v917
      %v1079 = vmul.f32 %v789, %v918
      %v1080 = vmul.f32 %v790, %v919
      %v1081 = vmul.f32 %v1049, %v1017
      %v1082 = vmul.f32 %v1050, %v1018
      %v1083 = vmul.f32 %v1051, %v1019
      %v1084 = vmul.f32 %v1052, %v1020
      %v1085 = vmul.f32 %v1053, %v1021
      %v1086 = vmul.f32 %v1054, %v1022
      %v1087 = vmul.f32 %v1055, %v1023
      %v1088 = vmul.f32 %v1056, %v1024
      %v1089 = vmul.f32 %v1057, %v1025
      %v1090 = vmul.f32 %v1058, %v1026
      %v1091 = vmul.f32 %v1059, %v1027
      %v1092 = vmul.f32 %v1060, %v1028
      %v1093 = vmul.f32 %v1061, %v1029
      %v1094 = vmul.f32 %v1062, %v1030
      %v1095 = vmul.f32 %v1063, %v1031
      %v1096 = vmul.f32 %v1064, %v1032
      %v1097 = vmul.f32 %v1065, %v1033
      %v1098 = vmul.f32 %v1066, %v1034
      %v1099 = vmul.f32 %v1067, %v1035
      %v1100 = vmul.f32 %v1068, %v1036
      %v1101 = vmul.f32 %v1069, %v1037
      %v1102 = vmul.f32 %v1070, %v1038
      %v1103 = vmul.f32 %v1071, %v1039
      %v1104 = vmul.f32 %v1072, %v1040
      %v1105 = vmul.f32 %v1073, %v1041
      %v1106 = vmul.f32 %v1074, %v1042
      %v1107 = vmul.f32 %v1075, %v1043
      %v1108 = vmul.f32 %v1076, %v1044
      %v1109 = vmul.f32 %v1077, %v1045
      %v1110 = vmul.f32 %v1078, %v1046
      %v1111 = vmul.f32 %v1079, %v1047
      %v1112 = vmul.f32 %v1080, %v1048
      %v1113 = vld [vmem:[#allocation2] sm:$0xff]
      %v1114 = vld [vmem:[%s208] sm:$0xff]
      %v1115 = vld [vmem:[%s208 + $0x8] sm:$0xff]
      %v1116 = vpack.c.bf16 %v1114, %v1114
      %v1117 = vpack.c.bf16 %v1115, %v1115
      %v1118 = vpack.c.bf16 %v1082, %v1081
      %v1119 = vpack.c.bf16 %v1084, %v1083
      %v1120 = vpack.c.bf16 %v1086, %v1085
      %v1121 = vpack.c.bf16 %v1088, %v1087
      %v1122 = vpack.c.bf16 %v1090, %v1089
      %v1123 = vpack.c.bf16 %v1092, %v1091
      %v1124 = vpack.c.bf16 %v1094, %v1093
      %v1125 = vpack.c.bf16 %v1096, %v1095
      %v1126 = vpack.c.bf16 %v1098, %v1097
      %v1127 = vpack.c.bf16 %v1100, %v1099
      %v1128 = vpack.c.bf16 %v1102, %v1101
      %v1129 = vpack.c.bf16 %v1104, %v1103
      %v1130 = vpack.c.bf16 %v1106, %v1105
      %v1131 = vpack.c.bf16 %v1108, %v1107
      %v1132 = vpack.c.bf16 %v1110, %v1109
      %v1133 = vpack.c.bf16 %v1112, %v1111
      %1134 = vmatpush.bf16.msra.mxu0 %v1125
      %1135 = vmatpush.bf16.msra.mxu0 %v1124
      %1136 = vmatpush.bf16.msra.mxu0 %v1123
      %1137 = vmatpush.bf16.msra.mxu0 %v1122
      %1138 = vmatpush.bf16.msra.mxu0 %v1121
      %1139 = vmatpush.bf16.msra.mxu0 %v1120
      %1140 = vmatpush.bf16.msra.mxu0 %v1119
      %1141 = vmatpush.bf16.msra.mxu0 %v1118
      %1142 = vmatmul.bf16.gmra.mxu0 %v1116
      %v1143 = vpop.f32.mrf.mxu0
      %v1144 = vadd.f32 0.0, %v1143
      %v1145 = vpop.f32.mrf.mxu0
      %1146 = vdwg.mxu0
      %1147 = vmatpush.bf16.msra.mxu0 %v1133
      %1148 = vmatpush.bf16.msra.mxu0 %v1132
      %1149 = vmatpush.bf16.msra.mxu0 %v1131
      %1150 = vmatpush.bf16.msra.mxu0 %v1130
      %1151 = vmatpush.bf16.msra.mxu0 %v1129
      %1152 = vmatpush.bf16.msra.mxu0 %v1128
      %1153 = vmatpush.bf16.msra.mxu0 %v1127
      %1154 = vmatpush.bf16.msra.mxu0 %v1126
      %1155 = vmatmul.bf16.gmra.mxu0 %v1117
      %v1156 = vpop.f32.mrf.mxu0
      %v1157 = vadd.f32 %v1144, %v1156
      %v1158 = vpop.f32.mrf.mxu0
      %1159 = vdwg.mxu0
      %v1160 = vadd.f32 %v1113, %v1157
      %1161 = vst [vmem:[#allocation2] sm:$0xff] %v1160
      %p1162 = scmp.eq.s32.totalorder %s20, 1
      // Predicated region
      $region33: #{_lambda_.1} parent=27 // pred_check
        %p1163 = pneg %p1162
      $region34: #{_lambda_.1} parent=27 // pred_check_branch
        %1165 = sbr.rel (%p1163) target = $region36
      $region35: #{_lambda_.1} parent=27 // pred_region
        %v1166 = vld [vmem:[#allocation2] sm:$0xff]
        %1167 = vst [vmem:[%s217] sm:$0xff] %v1166
      $region36: #{_lambda_.1} parent=27 // pred_fallthru
        _
      %p1168 = scmp.lt.s32.totalorder %s18, 1
      %s1169 = scalar_select %p1168, %s18, 1
      %p1170 = scmp.lt.s32.totalorder %s19, 1
      %s1171 = scalar_select %p1170, %s19, 1
      %s1172 = smul.addr %s1169, 2
      %s1173 = sadd.s32 %s1171, %s1172
      %s1174 = smul.addr %s1173, 8
      %s1175 = scalar_lea.vmem %s2, %s1174
      // Predicated region
      $region37: #{_lambda_.1} parent=27 // pred_check
        %p1176 = pneg %p108
      $region38: #{_lambda_.1} parent=27 // pred_check_branch
        %1178 = sbr.rel (%p1176) target = $region40
      $region39: #{_lambda_.1} parent=27 // pred_region
        _
      $region40: #{_lambda_.1} parent=27 // pred_fallthru
        _
    $region28: #{_lambda_.1} parent=5 // pred_fallthru
      _
    %p1179 = scmp.le.s32.totalorder 2, %s8
    // Predicated region
    $region41: #{_lambda_.1} parent=5 // pred_check
      %p1180 = pneg %p1179
    $region42: #{_lambda_.1} parent=5 // pred_check_branch
      %1182 = sbr.rel (%p1180) target = $region44
    $region43: #{_lambda_.1} parent=5 // pred_region
      %s1183 = ssub.s32 %s8, 2
      // Predicated region
      $region45: #{_lambda_.1} parent=43 // pred_check
        %p1184 = pneg %p114
      $region46: #{_lambda_.1} parent=43 // pred_check_branch
        %1186 = sbr.rel (%p1184) target = $region48
      $region47: #{_lambda_.1} parent=43 // pred_region
        %p1187 = scmp.lt.s32.totalorder %s21, 1
        %s1188 = scalar_select %p1187, %s21, 1
        %p1189 = scmp.lt.s32.totalorder %s22, 1
        %s1190 = scalar_select %p1189, %s22, 1
        %s1191 = smul.addr %s1188, 2
        %s1192 = sadd.s32 %s1190, %s1191
        %s1193 = smul.addr %s1192, 8
        %s1194 = scalar_lea.vmem %s2, %s1193
      $region48: #{_lambda_.1} parent=43 // pred_fallthru
        _
    $region44: #{_lambda_.1} parent=5 // pred_fallthru
      _
  $region6: #{_lambda_.1} parent=0 // loop_footer
    %s12 = sadd.s32 1, %s8
  $region7: #{_lambda_.1} parent=0 // loop_footer_branch
    %7 = sbr.rel target = $region3
  $region8: #{_lambda_.1} parent=0 // loop_exit
    _

</llo_original>
